<compile_context>
chip_gen: v7x
topology: tpu7x:2x2x1
jax: 0.10.0
libtpu: 0.0.40
codegen_flags: <defaults>
</compile_context>

<pallas_src>
import functools

import jax
import jax.numpy as jnp
from jax.experimental import pallas as pl
from jax.experimental.pallas import tpu as pltpu


_NEG_BIG = -1e30  # finite stand-in for -inf; exp() underflows to exactly 0.0


def _round_up(x, m):
    return (x + m - 1) // m * m


def _vmem_budget_bytes():
    """~half of physical VMEM (64 MiB on v5e/v6e, 32 MiB on v7x)."""
    cap = 128 * 1024 * 1024
    try:
        cap = int(pltpu.get_tpu_info().vmem_capacity_bytes)
    except Exception:
        pass
    return min(cap // 2, 64 * 1024 * 1024)


def _precise_recip(x):
    """EUP reciprocal + one Newton refinement (keeps ~f32 accuracy)."""
    r = pl.reciprocal(x, approx=True)
    return r * (2.0 - x * r)


# ----------------------------------------------------------------------------
# Kernels
# ----------------------------------------------------------------------------
def _sdpa_full_kernel(*args, scale, has_mask, compute_dtype, lk_valid,
                      needs_k_mask):
    """One (batch-tile, q-tile) step: full softmax over Lk, writes attn."""
    if has_mask:
        q_ref, k_ref, v_ref, mask_ref, out_ref, attn_ref = args
    else:
        q_ref, k_ref, v_ref, out_ref, attn_ref = args
        mask_ref = None

    # Pre-scale q once (O(tq*Dk) multiplies) and cast to the MXU dtype.
    q = (q_ref[...].astype(jnp.float32) * scale).astype(compute_dtype)
    k = k_ref[...].astype(compute_dtype)
    # Contract on the last axes (no explicit k.T relayout).
    s = jnp.einsum("bqd,bkd->bqk", q, k, preferred_element_type=jnp.float32)

    if mask_ref is not None:
        s = s + mask_ref[...].astype(jnp.float32) * _NEG_BIG
    if needs_k_mask:
        col = jax.lax.broadcasted_iota(jnp.int32, s.shape, 2)
        s = jnp.where(col < lk_valid, s, _NEG_BIG)

    m = jnp.max(s, axis=-1, keepdims=True)
    e = jnp.exp(s - m)
    denom = jnp.sum(e, axis=-1, keepdims=True)
    attn = e * _precise_recip(denom)          # one reciprocal per row

    attn_ref[...] = attn.astype(attn_ref.dtype)
    out_ref[...] = jnp.einsum(
        "bqk,bkd->bqd", attn.astype(compute_dtype),
        v_ref[...].astype(compute_dtype),
        preferred_element_type=jnp.float32).astype(out_ref.dtype)


def _sdpa_flash_kernel(*args, scale, has_mask, compute_dtype, lk_valid, tk,
                       needs_k_mask):
    """Flash-style step over one Lk tile with online softmax (no attn out)."""
    if has_mask:
        (q_ref, k_ref, v_ref, mask_ref, out_ref,
         qs_scr, m_scr, l_scr, acc_scr) = args
    else:
        q_ref, k_ref, v_ref, out_ref, qs_scr, m_scr, l_scr, acc_scr = args
        mask_ref = None

    kv_idx = pl.program_id(2)

    @pl.when(kv_idx == 0)
    def _():
        # Hoisted: scale q once per q tile, not once per kv step.
        qs_scr[...] = (q_ref[...].astype(jnp.float32) * scale).astype(
            qs_scr.dtype)
        m_scr[...] = jnp.full(m_scr.shape, _NEG_BIG, dtype=m_scr.dtype)
        l_scr[...] = jnp.zeros(l_scr.shape, l_scr.dtype)
        acc_scr[...] = jnp.zeros(acc_scr.shape, acc_scr.dtype)

    s = jnp.einsum("bqd,bkd->bqk", qs_scr[...],
                   k_ref[...].astype(compute_dtype),
                   preferred_element_type=jnp.float32)
    if mask_ref is not None:
        s = s + mask_ref[...].astype(jnp.float32) * _NEG_BIG
    if needs_k_mask:
        col = kv_idx * tk + jax.lax.broadcasted_iota(jnp.int32, s.shape, 2)
        s = jnp.where(col < lk_valid, s, _NEG_BIG)

    m_prev = m_scr[...]
    m_new = jnp.maximum(m_prev, jnp.max(s, axis=-1, keepdims=True))
    alpha = jnp.exp(m_prev - m_new)
    p = jnp.exp(s - m_new)
    l_scr[...] = alpha * l_scr[...] + jnp.sum(p, axis=-1, keepdims=True)
    acc_scr[...] = alpha * acc_scr[...] + jnp.einsum(
        "bqk,bkd->bqd", p.astype(compute_dtype),
        v_ref[...].astype(compute_dtype),
        preferred_element_type=jnp.float32)
    m_scr[...] = m_new

    @pl.when(kv_idx == pl.num_programs(2) - 1)
    def _():
        inv_l = _precise_recip(l_scr[...])
        out_ref[...] = (acc_scr[...] * inv_l).astype(out_ref.dtype)


# ----------------------------------------------------------------------------
# Wrapper
# ----------------------------------------------------------------------------
def scaled_dot_product_attention(q, k, v, mask=None, *, temperature,
                                 return_attn=True, mxu_dtype=None,
                                 attn_dtype=None):
    """Pallas implementation of ScaledDotProductAttention.forward.

    Returns (output, attn) like the PyTorch module when return_attn=True;
    (output, None) on the flash fast path (return_attn=False).

    mxu_dtype: dtype for both matmuls (f32 accumulation).  Defaults to bf16
      when the inputs are bf16, else f32 (preserves the module's precision).
    attn_dtype: dtype of the returned attention matrix (default q.dtype);
      pass jnp.bfloat16 to halve the (B,Lq,Lk) HBM write-back.
    """
    B, Lq, Dk = q.shape
    Bk, Lk, Dk2 = k.shape
    Bv, Lkv, Dv = v.shape
    assert Dk == Dk2 and Bk == B and Bv == B and Lkv == Lk

    scale = 1.0 / float(temperature)
    has_mask = mask is not None
    out_dtype = q.dtype

    if mxu_dtype is None:
        is_bf16 = any(jnp.dtype(x.dtype) == jnp.dtype(jnp.bfloat16)
                      for x in (q, k, v))
        mxu_dtype = jnp.bfloat16 if is_bf16 else jnp.float32
    if attn_dtype is None:
        attn_dtype = q.dtype

    # --- pad Lq/Lk so every block stays (8,128)-aligned ----------------------
    Lq_pad = _round_up(Lq, 8)
    Lk_pad = _round_up(Lk, 128) if Lk > 128 else Lk
    needs_k_mask = Lk_pad != Lk

    if Lq_pad != Lq:
        q = jnp.pad(q, ((0, 0), (0, Lq_pad - Lq), (0, 0)))
    if Lk_pad != Lk:
        k = jnp.pad(k, ((0, 0), (0, Lk_pad - Lk), (0, 0)))
        v = jnp.pad(v, ((0, 0), (0, Lk_pad - Lk), (0, 0)))
    if has_mask and (Lq_pad != Lq or Lk_pad != Lk):
        mask = jnp.pad(mask, ((0, 0), (0, Lq_pad - Lq), (0, Lk_pad - Lk)))
    if has_mask:
        mask_i8 = (mask != 0).astype(jnp.int8)   # 4x less HBM than int32

    budget = _vmem_budget_bytes()
    qb = jnp.dtype(q.dtype).itemsize
    kb = jnp.dtype(k.dtype).itemsize
    vb = jnp.dtype(v.dtype).itemsize
    ob = jnp.dtype(out_dtype).itemsize
    ab = jnp.dtype(attn_dtype).itemsize
    cb = jnp.dtype(mxu_dtype).itemsize

    # Fold batches per grid step for tiny per-batch problems (amortize the
    # ~0.35us/step pipeline overhead), but keep the parallel grid extent >= 2
    # so v7x's two TensorCores both get work.
    if Lq_pad <= 128 and Lk_pad <= 128 and B <= 64:
        bt = max(1, B // 2)
        while B % bt:
            bt -= 1
    else:
        bt = 1

    def _q_tile_candidates():
        cands = [c for c in (512, 256, 128, 64, 32, 16, 8)
                 if c <= Lq_pad and Lq_pad % c == 0]
        return cands or [Lq_pad]

    # ------------------------------------------------------------------------
    if return_attn:
        def _full_bytes(tq_):
            inb = bt * tq_ * Dk * qb + bt * Lk_pad * Dk * kb + bt * Lk_pad * Dv * vb
            if has_mask:
                inb += bt * tq_ * Lk_pad
            outb = bt * tq_ * Dv * ob + bt * tq_ * Lk_pad * ab
            return 2 * (inb + outb)

        tq = None
        for c in _q_tile_candidates():
            if _full_bytes(c) <= 0.75 * budget:
                tq = c
                break
        if tq is None:
            tq = _q_tile_candidates()[-1]

        grid = (B // bt, Lq_pad // tq)
        in_specs = [
            pl.BlockSpec((bt, tq, Dk), lambda b, i: (b, i, 0)),
            pl.BlockSpec((bt, Lk_pad, Dk), lambda b, i: (b, 0, 0)),
            pl.BlockSpec((bt, Lk_pad, Dv), lambda b, i: (b, 0, 0)),
        ]
        inputs = [q, k, v]
        if has_mask:
            in_specs.append(pl.BlockSpec((bt, tq, Lk_pad),
                                         lambda b, i: (b, i, 0)))
            inputs.append(mask_i8)

        kernel = functools.partial(
            _sdpa_full_kernel, scale=scale, has_mask=has_mask,
            compute_dtype=mxu_dtype, lk_valid=Lk, needs_k_mask=needs_k_mask)

        out, attn = pl.pallas_call(
            kernel,
            out_shape=(
                jax.ShapeDtypeStruct((B, Lq_pad, Dv), out_dtype),
                jax.ShapeDtypeStruct((B, Lq_pad, Lk_pad), attn_dtype),
            ),
            grid_spec=pltpu.PrefetchScalarGridSpec(
                num_scalar_prefetch=0,
                grid=grid,
                in_specs=in_specs,
                out_specs=[
                    pl.BlockSpec((bt, tq, Dv), lambda b, i: (b, i, 0)),
                    pl.BlockSpec((bt, tq, Lk_pad), lambda b, i: (b, i, 0)),
                ],
            ),
            compiler_params=pltpu.CompilerParams(
                dimension_semantics=("parallel", "parallel"),
                vmem_limit_bytes=budget),
        )(*inputs)
        return out[:, :Lq, :], attn[:, :Lq, :Lk]

    # --- flash path: no attention write-back, Lk tiled with online softmax ---
    def _flash_bytes(tq_, tk_):
        inb = bt * tq_ * Dk * qb + bt * tk_ * Dk * kb + bt * tk_ * Dv * vb
        if has_mask:
            inb += bt * tq_ * tk_
        outb = bt * tq_ * Dv * ob
        scratch = bt * tq_ * (2 + Dv) * 4 + bt * tq_ * Dk * cb
        return 2 * (inb + outb) + scratch

    tq_cands = _q_tile_candidates()
    tk_cands = [c for c in (2048, 1024, 512, 256, 128)
                if c <= Lk_pad and Lk_pad % c == 0]
    tk_cands = tk_cands or [Lk_pad]

    tq = tk = None
    for tq_c in tq_cands:                 # prefer large tq: fewer K/V re-reads
        for tk_c in tk_cands:
            if _flash_bytes(tq_c, tk_c) <= 0.75 * budget:
                tq, tk = tq_c, tk_c
                break
        if tq is not None:
            break
    if tq is None:
        tq, tk = tq_cands[-1], tk_cands[-1]

    grid = (B // bt, Lq_pad // tq, Lk_pad // tk)
    in_specs = [
        pl.BlockSpec((bt, tq, Dk), lambda b, i, j: (b, i, 0)),
        pl.BlockSpec((bt, tk, Dk), lambda b, i, j: (b, j, 0)),
        pl.BlockSpec((bt, tk, Dv), lambda b, i, j: (b, j, 0)),
    ]
    inputs = [q, k, v]
    if has_mask:
        in_specs.append(pl.BlockSpec((bt, tq, tk), lambda b, i, j: (b, i, j)))
        inputs.append(mask_i8)

    kernel = functools.partial(
        _sdpa_flash_kernel, scale=scale, has_mask=has_mask,
        compute_dtype=mxu_dtype, lk_valid=Lk, tk=tk,
        needs_k_mask=needs_k_mask)

    out = pl.pallas_call(
        kernel,
        out_shape=jax.ShapeDtypeStruct((B, Lq_pad, Dv), out_dtype),
        grid_spec=pltpu.PrefetchScalarGridSpec(
            num_scalar_prefetch=0,
            grid=grid,
            in_specs=in_specs,
            out_specs=pl.BlockSpec((bt, tq, Dv), lambda b, i, j: (b, i, 0)),
            scratch_shapes=[
                pltpu.VMEM((bt, tq, Dk), mxu_dtype),    # cached scaled q
                pltpu.VMEM((bt, tq, 1), jnp.float32),   # running max
                pltpu.VMEM((bt, tq, 1), jnp.float32),   # running denom
                pltpu.VMEM((bt, tq, Dv), jnp.float32),  # output accumulator
            ],
        ),
        compiler_params=pltpu.CompilerParams(
            dimension_semantics=("parallel", "parallel", "arbitrary"),
            vmem_limit_bytes=budget),
    )(*inputs)
    return out[:, :Lq, :], None


# ----------------------------------------------------------------------------
# Reference + tests
# ----------------------------------------------------------------------------
def _reference(q, k, v, mask, temperature):
    attn = jnp.einsum("bqd,bkd->bqk", q, k) / temperature
    if mask is not None:
        attn = jnp.where(mask != 0, -jnp.inf, attn)   # masked_fill(mask, -inf)
    attn = jax.nn.softmax(attn, axis=2)
    out = jnp.einsum("bqk,bkd->bqd", attn, v)
    return out, attn


if __name__ == "__main__":
    key = jax.random.PRNGKey(0)
    kq, kk, kvv, km, kq2, kk2, kv2, km2 = jax.random.split(key, 8)

    # --- small shape matching the module's typical per-head use -------------
    B, Lq, Lk, Dk, Dv = 2, 8, 8, 32, 32
    temperature = float(Dk) ** 0.5

    q = jax.random.normal(kq, (B, Lq, Dk), dtype=jnp.float32)
    k = jax.random.normal(kk, (B, Lk, Dk), dtype=jnp.float32)
    v = jax.random.normal(kvv, (B, Lk, Dv), dtype=jnp.float32)
    # Mask that never blanks a full row (keeps the reference softmax finite).
    mask = (jax.random.uniform(km, (B, Lq, Lk)) > 0.7).astype(jnp.int32)
    mask = mask.at[:, :, 0].set(0)

    ref_out, ref_attn = _reference(q, k, v, mask, temperature)

    # Default path: matches the module's (output, attn) return, f32 precision.
    out, attn = scaled_dot_product_attention(q, k, v, mask,
                                             temperature=temperature)
    jax.block_until_ready((out, attn))
    assert jnp.allclose(out, ref_out, atol=1e-5, rtol=1e-5), "output mismatch"
    assert jnp.allclose(attn, ref_attn, atol=1e-5, rtol=1e-5), "attn mismatch"

    # Fast path: flash-style online softmax, no attention write-back.
    out2, attn2 = scaled_dot_product_attention(q, k, v, mask,
                                               temperature=temperature,
                                               return_attn=False)
    jax.block_until_ready(out2)
    assert attn2 is None
    assert jnp.allclose(out2, ref_out, atol=1e-5, rtol=1e-5), "flash mismatch"

    # No-mask path (mask input skipped entirely).
    out3, _ = scaled_dot_product_attention(q, k, v, None,
                                           temperature=temperature,
                                           return_attn=False)
    jax.block_until_ready(out3)
    ref_out3, _ = _reference(q, k, v, None, temperature)
    assert jnp.allclose(out3, ref_out3, atol=1e-5, rtol=1e-5), "no-mask mismatch"

    # Non-aligned shape: exercises the Lq/Lk padding + in-kernel padding mask.
    B2, Lq2, Lk2 = 2, 12, 136
    q2 = jax.random.normal(kq2, (B2, Lq2, Dk), dtype=jnp.float32)
    k2 = jax.random.normal(kk2, (B2, Lk2, Dk), dtype=jnp.float32)
    v2 = jax.random.normal(kv2, (B2, Lk2, Dv), dtype=jnp.float32)
    mask2 = (jax.random.uniform(km2, (B2, Lq2, Lk2)) > 0.7).astype(jnp.int32)
    mask2 = mask2.at[:, :, 0].set(0)
    ref_out2p, ref_attn2p = _reference(q2, k2, v2, mask2, temperature)

    out4, attn4 = scaled_dot_product_attention(q2, k2, v2, mask2,
                                               temperature=temperature)
    jax.block_until_ready((out4, attn4))
    assert out4.shape == (B2, Lq2, Dv) and attn4.shape == (B2, Lq2, Lk2)
    assert jnp.allclose(out4, ref_out2p, atol=1e-5, rtol=1e-5), "pad out mismatch"
    assert jnp.allclose(attn4, ref_attn2p, atol=1e-5, rtol=1e-5), "pad attn mismatch"

    out5, _ = scaled_dot_product_attention(q2, k2, v2, mask2,
                                           temperature=temperature,
                                           return_attn=False)
    jax.block_until_ready(out5)
    assert jnp.allclose(out5, ref_out2p, atol=1e-5, rtol=1e-5), "pad flash mismatch"

    # bf16 end-to-end: matmuls run on the MXU's fast bf16 path, f32 accumulate.
    qb, kb, vb = (x.astype(jnp.bfloat16) for x in (q, k, v))
    ref_out_b, _ = _reference(qb.astype(jnp.float32), kb.astype(jnp.float32),
                              vb.astype(jnp.float32), mask, temperature)
    out6, _ = scaled_dot_product_attention(qb, kb, vb, mask,
                                           temperature=temperature,
                                           return_attn=False)
    jax.block_until_ready(out6)
    assert jnp.allclose(out6.astype(jnp.float32), ref_out_b,
                        atol=5e-2, rtol=5e-2), "bf16 mismatch"

    print("KERNEL_OK")
</pallas_src>

<mosaic_0001>
module attributes {stable_mosaic.version = 11 : i64} {
  func.func @_sdpa_full_kernel(%arg0: i32, %arg1: i32, %arg2: memref<1x8x32xf32, #tpu.memory_space<vmem>>, %arg3: memref<1x8x32xf32, #tpu.memory_space<vmem>>, %arg4: memref<1x8x32xf32, #tpu.memory_space<vmem>>, %arg5: memref<1x8x8xi8, #tpu.memory_space<vmem>>, %arg6: memref<1x8x32xf32, #tpu.memory_space<vmem>>, %arg7: memref<1x8x8xf32, #tpu.memory_space<vmem>>) attributes {dimension_semantics = [#tpu.dimension_semantics<parallel>, #tpu.dimension_semantics<parallel>], iteration_bounds = array<i64: 2, 1>, scalar_prefetch = 0 : i64, scratch_operands = 0 : i64, tpu.core_type = #tpu.core_type<tc>, window_params = [{transform_indices = @transform_0, window_bounds = array<i64: 1, 8, 32>}, {transform_indices = @transform_1, window_bounds = array<i64: 1, 8, 32>}, {transform_indices = @transform_2, window_bounds = array<i64: 1, 8, 32>}, {transform_indices = @transform_3, window_bounds = array<i64: 1, 8, 8>}, {transform_indices = @transform_4, window_bounds = array<i64: 1, 8, 32>}, {transform_indices = @transform_5, window_bounds = array<i64: 1, 8, 8>}]} {
    %c0 = arith.constant 0 : index
    %c0_0 = arith.constant 0 : index
    %c0_1 = arith.constant 0 : index
    %0 = vector.load %arg2[%c0, %c0_0, %c0_1] : memref<1x8x32xf32, #tpu.memory_space<vmem>>, vector<1x8x32xf32>
    %cst = arith.constant 0.176776692 : f32
    %1 = vector.broadcast %cst : f32 to vector<1x8x32xf32>
    %2 = arith.mulf %0, %1 : vector<1x8x32xf32>
    %c0_2 = arith.constant 0 : index
    %c0_3 = arith.constant 0 : index
    %c0_4 = arith.constant 0 : index
    %3 = vector.load %arg3[%c0_2, %c0_3, %c0_4] : memref<1x8x32xf32, #tpu.memory_space<vmem>>, vector<1x8x32xf32>
    "tpu.trace_start"() <{level = 10 : i32, message = "bqd,bkd->bqk"}> : () -> ()
    %cst_5 = arith.constant dense<0.000000e+00> : vector<1x8x8xf32>
    %4 = tpu.matmul %2, %3, %cst_5 {dimension_numbers = #tpu.dot_dimension_numbers<[2], [2], [1], [1], [0, 0, 0, 1, 1, 1], [0], [0]>} : vector<1x8x32xf32>, vector<1x8x32xf32>, vector<1x8x8xf32> -> vector<1x8x8xf32>
    "tpu.trace_stop"() : () -> ()
    %c0_6 = arith.constant 0 : index
    %c0_7 = arith.constant 0 : index
    %c0_8 = arith.constant 0 : index
    %5 = vector.load %arg5[%c0_6, %c0_7, %c0_8] : memref<1x8x8xi8, #tpu.memory_space<vmem>>, vector<1x8x8xi8>
    %6 = arith.sitofp %5 : vector<1x8x8xi8> to vector<1x8x8xf32>
    %cst_9 = arith.constant -1.000000e+30 : f32
    %7 = vector.broadcast %cst_9 : f32 to vector<1x8x8xf32>
    %8 = arith.mulf %6, %7 : vector<1x8x8xf32>
    %9 = arith.addf %4, %8 : vector<1x8x8xf32>
    %cst_10 = arith.constant dense<0xFF800000> : vector<1x8xf32>
    %10 = vector.multi_reduction <maximumf>, %9, %cst_10 [2] : vector<1x8x8xf32> to vector<1x8xf32>
    %11 = vector.shape_cast %10 : vector<1x8xf32> to vector<1x8x1xf32>
    %12 = vector.broadcast %11 : vector<1x8x1xf32> to vector<1x8x8xf32>
    %13 = arith.subf %9, %12 : vector<1x8x8xf32>
    %14 = math.exp %13 : vector<1x8x8xf32>
    %cst_11 = arith.constant dense<0.000000e+00> : vector<1x8xf32>
    %15 = vector.multi_reduction <add>, %14, %cst_11 [2] : vector<1x8x8xf32> to vector<1x8xf32>
    %16 = vector.shape_cast %15 : vector<1x8xf32> to vector<1x8x1xf32>
    %17 = tpu.reciprocal %16 {approx = true} : vector<1x8x1xf32> -> vector<1x8x1xf32>
    %18 = arith.mulf %16, %17 : vector<1x8x1xf32>
    %cst_12 = arith.constant 2.000000e+00 : f32
    %19 = vector.broadcast %cst_12 : f32 to vector<1x8x1xf32>
    %20 = arith.subf %19, %18 : vector<1x8x1xf32>
    %21 = arith.mulf %17, %20 : vector<1x8x1xf32>
    %22 = vector.broadcast %21 : vector<1x8x1xf32> to vector<1x8x8xf32>
    %23 = arith.mulf %14, %22 : vector<1x8x8xf32>
    %c0_13 = arith.constant 0 : index
    %c0_14 = arith.constant 0 : index
    %c0_15 = arith.constant 0 : index
    %24 = vector.load %arg7[%c0_13, %c0_14, %c0_15] : memref<1x8x8xf32, #tpu.memory_space<vmem>>, vector<1x8x8xf32>
    tpu.vector_store %arg7[%c0_13, %c0_14, %c0_15], %23 {strides = array<i32>} : memref<1x8x8xf32, #tpu.memory_space<vmem>>, vector<1x8x8xf32>,
    %c0_16 = arith.constant 0 : index
    %c0_17 = arith.constant 0 : index
    %c0_18 = arith.constant 0 : index
    %25 = vector.load %arg4[%c0_16, %c0_17, %c0_18] : memref<1x8x32xf32, #tpu.memory_space<vmem>>, vector<1x8x32xf32>
    "tpu.trace_start"() <{level = 10 : i32, message = "bqk,bkd->bqd"}> : () -> ()
    %cst_19 = arith.constant dense<0.000000e+00> : vector<1x8x32xf32>
    %26 = tpu.matmul %23, %25, %cst_19 {dimension_numbers = #tpu.dot_dimension_numbers<[2], [1], [1], [2], [0, 0, 0, 1, 1, 2], [0], [0]>} : vector<1x8x8xf32>, vector<1x8x32xf32>, vector<1x8x32xf32> -> vector<1x8x32xf32>
    "tpu.trace_stop"() : () -> ()
    %c0_20 = arith.constant 0 : index
    %c0_21 = arith.constant 0 : index
    %c0_22 = arith.constant 0 : index
    %27 = vector.load %arg6[%c0_20, %c0_21, %c0_22] : memref<1x8x32xf32, #tpu.memory_space<vmem>>, vector<1x8x32xf32>
    tpu.vector_store %arg6[%c0_20, %c0_21, %c0_22], %26 {strides = array<i32>} : memref<1x8x32xf32, #tpu.memory_space<vmem>>, vector<1x8x32xf32>,
    return
  }
  func.func @transform_0(%arg0: i32, %arg1: i32) -> (i32, i32, i32) {
    %c0_i32 = arith.constant 0 : i32
    %c0_i32_0 = arith.constant 0 : i32
    return %arg0, %arg1, %c0_i32 : i32, i32, i32
  }
  func.func @transform_1(%arg0: i32, %arg1: i32) -> (i32, i32, i32) {
    %c0_i32 = arith.constant 0 : i32
    %c0_i32_0 = arith.constant 0 : i32
    %c0_i32_1 = arith.constant 0 : i32
    return %arg0, %c0_i32, %c0_i32_0 : i32, i32, i32
  }
  func.func @transform_2(%arg0: i32, %arg1: i32) -> (i32, i32, i32) {
    %c0_i32 = arith.constant 0 : i32
    %c0_i32_0 = arith.constant 0 : i32
    %c0_i32_1 = arith.constant 0 : i32
    return %arg0, %c0_i32, %c0_i32_0 : i32, i32, i32
  }
  func.func @transform_3(%arg0: i32, %arg1: i32) -> (i32, i32, i32) {
    %c0_i32 = arith.constant 0 : i32
    %c0_i32_0 = arith.constant 0 : i32
    return %arg0, %arg1, %c0_i32 : i32, i32, i32
  }
  func.func @transform_4(%arg0: i32, %arg1: i32) -> (i32, i32, i32) {
    %c0_i32 = arith.constant 0 : i32
    %c0_i32_0 = arith.constant 0 : i32
    return %arg0, %arg1, %c0_i32 : i32, i32, i32
  }
  func.func @transform_5(%arg0: i32, %arg1: i32) -> (i32, i32, i32) {
    %c0_i32 = arith.constant 0 : i32
    %c0_i32_0 = arith.constant 0 : i32
    return %arg0, %arg1, %c0_i32 : i32, i32, i32
  }
}

</mosaic_0001>

<llo_original>
// kernel: tpu_custom_call.1
$region0: #{tpu_custom_call.1}
  #allocation0 [shape = 'u32[]', space=smem, size = 0x4, offset = 0x4, fixed_abs, tag = 'smem constant byte address 0x4 - core index']
  #allocation1 [shape = 'u32[144,128]{1,0:T(1,128)}', space=vmem, size = 0x12000, scoped, tag = 'internal scratch']
  %s0 = inlined_call_operand.hbm [shape: f32[2,8,32], index: 0, kind: input, shape index: {}]
  %s1 = inlined_call_operand.hbm [shape: f32[2,8,32], index: 1, kind: input, shape index: {}]
  %s2 = inlined_call_operand.hbm [shape: f32[2,8,32], index: 2, kind: input, shape index: {}]
  %s3 = inlined_call_operand.hbm [shape: s8[2,8,8], index: 3, kind: input, shape index: {}]
  %s4 = inlined_call_operand.hbm [shape: f32[2,8,32], index: 4, kind: output, shape index: {0}]
  %s5 = inlined_call_operand.hbm [shape: f32[2,8,8], index: 5, kind: output, shape index: {1}]
  %6 = xla_tuple %s4, %s5
  %s7 = sld [smem:[#allocation0]]
  $region73: #{tpu_custom_call.1} parent=0
    _
  %s9 = ssub.s32 1, %s7
  %s10 = scalar_select 0, %s9, %s7
  $region1: #{tpu_custom_call.1} parent=0
    #allocation2 [shape = 'u8[8192]{0}', space=vmem, size = 0x2000, scoped, tag = 'input window, operand 0']
    #allocation3 [shape = 's32[2]{0}', space=sflag, size = 0x8, scoped, tag = 'scoped memory for tpu_custom_call.1']
    #allocation4 [shape = 's32[2]{0}', space=sflag, size = 0x8, scoped, tag = 'scoped memory for tpu_custom_call.1']
    #allocation5 [shape = 'u8[8192]{0}', space=vmem, size = 0x2000, scoped, tag = 'input window, operand 1']
    #allocation6 [shape = 's32[2]{0}', space=sflag, size = 0x8, scoped, tag = 'scoped memory for tpu_custom_call.1']
    #allocation7 [shape = 'u8[8192]{0}', space=vmem, size = 0x2000, scoped, tag = 'input window, operand 2']
    #allocation8 [shape = 'u8[2048]{0}', space=vmem, size = 0x800, scoped, tag = 'input window, operand 3']
    #allocation9 [shape = 's32[2]{0}', space=sflag, size = 0x8, scoped, tag = 'scoped memory for tpu_custom_call.1']
    #allocation10 [shape = 'u8[8192]{0}', space=vmem, size = 0x2000, scoped, tag = 'output window, operand 0']
    #allocation11 [shape = 'u8[8192]{0}', space=vmem, size = 0x2000, scoped, tag = 'output window, operand 1']
    #allocation12 [shape = 's32[2]{0}', space=sflag, size = 0x8, scoped, tag = 'scoped memory for tpu_custom_call.1']
    %11 = vsyncpa [#allocation3], 0
    %s12 = scalar_lea.sflag [#allocation3], 1
    %13 = vsyncpa %s12, 0
    %14 = vsyncpa [#allocation6], 0
    %s15 = scalar_lea.sflag [#allocation6], 1
    %16 = vsyncpa %s15, 0
    %17 = vsyncpa [#allocation9], 0
    %s18 = scalar_lea.sflag [#allocation9], 1
    %19 = vsyncpa %s18, 0
    %20 = vsyncpa [#allocation4], 0
    %s21 = scalar_lea.sflag [#allocation4], 1
    %22 = vsyncpa %s21, 0
    %23 = vsyncpa [#allocation12], 0
    %s24 = scalar_lea.sflag [#allocation12], 1
    %25 = vsyncpa %s24, 0
    loop: start=0, step=1, limit=4
    $region2: #{tpu_custom_call.1} parent=1 // loop_pre_header
      _
    $region3: #{tpu_custom_call.1} parent=1 // loop_header
      %s27 = sphi 0, %s31
      %p28 = scmp.ge.s32.totalorder %s27, 4
      %s34 = sphi 0, %s46
      %s35 = sphi 0, %s42
      %s36 = sphi 0, %s34
      %s37 = sphi 0, %s35
      %s38 = sphi 0, %s36
      %s39 = sphi 0, %s37
      %s51 = sphi 0, %s53
      %s54 = sphi 0, %s51
      %s55 = sphi 0, %s54
      %s71 = sphi 0, %s55
      %s77 = sphi 0, %s79
      %s80 = sphi 0, %s77
      %s81 = sphi 0, %s80
      %s97 = sphi 0, %s81
      %s103 = sphi 0, %s105
      %s106 = sphi 0, %s103
      %s107 = sphi 0, %s106
      %s123 = sphi 0, %s107
      %s131 = sphi 0, %s133
      %s134 = sphi 0, %s131
      %s135 = sphi 0, %s134
      %s151 = sphi 0, %s135
      %s159 = sphi 0, %s161
      %s162 = sphi 0, %s159
      %s163 = sphi 0, %s162
      %s179 = sphi 0, %s163
      %s187 = sphi 0, %s189
      %s190 = sphi 0, %s187
      %s191 = sphi 0, %s190
      %s207 = sphi 0, %s191
    $region4: #{tpu_custom_call.1} parent=1 // loop_header_branch
      %30 = sbr.rel (%p28) target = $region8
    $region5: #{tpu_custom_call.1} parent=1 // loop_body
      %s32 = ssub.s32 %s27, 1
      %s33 = ssub.s32 %s27, 2
      %s40 = sadd.s32 1, %s35
      %p41 = scmp.ge.s32.totalorder %s40, 1
      %s42 = scalar_select %p41, 0, %s40
      %s43 = sadd.s32 1, %s34
      %s44 = scalar_select %p41, %s43, %s34
      %p45 = scmp.ge.s32.totalorder %s44, 2
      %s46 = scalar_select %p45, 0, %s44
      %s47 = ssub.s32 %s34, %s46
      %s48 = ssub.s32 %s35, %s42
      %s49 = sor.u32 %s47, %s48
      %p50 = scmp.eq.s32.totalorder %s49, 0
      %s52 = sadd.s32 %s51, 1
      %s53 = scalar_select %p50, %s51, %s52
      %p56 = pneg %p50
      %p57 = scmp.eq.s32.totalorder %s27, 1
      %p58 = por %p56, %p57
      %p59 = scmp.ne.s32.totalorder %s51, %s54
      %p60 = scmp.eq.s32.totalorder %s27, 0
      %p61 = por %p59, %p60
      %p62 = scmp.ne.s32.totalorder %s51, %s54
      %p63 = scmp.eq.s32.totalorder %s32, 1
      %p64 = por %p62, %p63
      %p65 = scmp.ne.s32.totalorder %s54, %s55
      %p66 = scmp.eq.s32.totalorder %s32, 0
      %p67 = por %p65, %p66
      %p68 = scmp.ne.s32.totalorder %s54, %s55
      %p69 = scmp.eq.s32.totalorder %s33, 1
      %p70 = por %p68, %p69
      %p72 = scmp.ne.s32.totalorder %s55, %s71
      %p73 = scmp.eq.s32.totalorder %s33, 0
      %p74 = por %p72, %p73
      %s75 = ssub.s32 %s34, %s46
      %p76 = scmp.eq.s32.totalorder %s75, 0
      %s78 = sadd.s32 %s77, 1
      %s79 = scalar_select %p76, %s77, %s78
      %p82 = pneg %p76
      %p83 = scmp.eq.s32.totalorder %s27, 1
      %p84 = por %p82, %p83
      %p85 = scmp.ne.s32.totalorder %s77, %s80
      %p86 = scmp.eq.s32.totalorder %s27, 0
      %p87 = por %p85, %p86
      %p88 = scmp.ne.s32.totalorder %s77, %s80
      %p89 = scmp.eq.s32.totalorder %s32, 1
      %p90 = por %p88, %p89
      %p91 = scmp.ne.s32.totalorder %s80, %s81
      %p92 = scmp.eq.s32.totalorder %s32, 0
      %p93 = por %p91, %p92
      %p94 = scmp.ne.s32.totalorder %s80, %s81
      %p95 = scmp.eq.s32.totalorder %s33, 1
      %p96 = por %p94, %p95
      %p98 = scmp.ne.s32.totalorder %s81, %s97
      %p99 = scmp.eq.s32.totalorder %s33, 0
      %p100 = por %p98, %p99
      %s101 = ssub.s32 %s34, %s46
      %p102 = scmp.eq.s32.totalorder %s101, 0
      %s104 = sadd.s32 %s103, 1
      %s105 = scalar_select %p102, %s103, %s104
      %p108 = pneg %p102
      %p109 = scmp.eq.s32.totalorder %s27, 1
      %p110 = por %p108, %p109
      %p111 = scmp.ne.s32.totalorder %s103, %s106
      %p112 = scmp.eq.s32.totalorder %s27, 0
      %p113 = por %p111, %p112
      %p114 = scmp.ne.s32.totalorder %s103, %s106
      %p115 = scmp.eq.s32.totalorder %s32, 1
      %p116 = por %p114, %p115
      %p117 = scmp.ne.s32.totalorder %s106, %s107
      %p118 = scmp.eq.s32.totalorder %s32, 0
      %p119 = por %p117, %p118
      %p120 = scmp.ne.s32.totalorder %s106, %s107
      %p121 = scmp.eq.s32.totalorder %s33, 1
      %p122 = por %p120, %p121
      %p124 = scmp.ne.s32.totalorder %s107, %s123
      %p125 = scmp.eq.s32.totalorder %s33, 0
      %p126 = por %p124, %p125
      %s127 = ssub.s32 %s34, %s46
      %s128 = ssub.s32 %s35, %s42
      %s129 = sor.u32 %s127, %s128
      %p130 = scmp.eq.s32.totalorder %s129, 0
      %s132 = sadd.s32 %s131, 1
      %s133 = scalar_select %p130, %s131, %s132
      %p136 = pneg %p130
      %p137 = scmp.eq.s32.totalorder %s27, 1
      %p138 = por %p136, %p137
      %p139 = scmp.ne.s32.totalorder %s131, %s134
      %p140 = scmp.eq.s32.totalorder %s27, 0
      %p141 = por %p139, %p140
      %p142 = scmp.ne.s32.totalorder %s131, %s134
      %p143 = scmp.eq.s32.totalorder %s32, 1
      %p144 = por %p142, %p143
      %p145 = scmp.ne.s32.totalorder %s134, %s135
      %p146 = scmp.eq.s32.totalorder %s32, 0
      %p147 = por %p145, %p146
      %p148 = scmp.ne.s32.totalorder %s134, %s135
      %p149 = scmp.eq.s32.totalorder %s33, 1
      %p150 = por %p148, %p149
      %p152 = scmp.ne.s32.totalorder %s135, %s151
      %p153 = scmp.eq.s32.totalorder %s33, 0
      %p154 = por %p152, %p153
      %s155 = ssub.s32 %s34, %s46
      %s156 = ssub.s32 %s35, %s42
      %s157 = sor.u32 %s155, %s156
      %p158 = scmp.eq.s32.totalorder %s157, 0
      %s160 = sadd.s32 %s159, 1
      %s161 = scalar_select %p158, %s159, %s160
      %p164 = pneg %p158
      %p165 = scmp.eq.s32.totalorder %s27, 1
      %p166 = por %p164, %p165
      %p167 = scmp.ne.s32.totalorder %s159, %s162
      %p168 = scmp.eq.s32.totalorder %s27, 0
      %p169 = por %p167, %p168
      %p170 = scmp.ne.s32.totalorder %s159, %s162
      %p171 = scmp.eq.s32.totalorder %s32, 1
      %p172 = por %p170, %p171
      %p173 = scmp.ne.s32.totalorder %s162, %s163
      %p174 = scmp.eq.s32.totalorder %s32, 0
      %p175 = por %p173, %p174
      %p176 = scmp.ne.s32.totalorder %s162, %s163
      %p177 = scmp.eq.s32.totalorder %s33, 1
      %p178 = por %p176, %p177
      %p180 = scmp.ne.s32.totalorder %s163, %s179
      %p181 = scmp.eq.s32.totalorder %s33, 0
      %p182 = por %p180, %p181
      %s183 = ssub.s32 %s34, %s46
      %s184 = ssub.s32 %s35, %s42
      %s185 = sor.u32 %s183, %s184
      %p186 = scmp.eq.s32.totalorder %s185, 0
      %s188 = sadd.s32 %s187, 1
      %s189 = scalar_select %p186, %s187, %s188
      %p192 = pneg %p186
      %p193 = scmp.eq.s32.totalorder %s27, 1
      %p194 = por %p192, %p193
      %p195 = scmp.ne.s32.totalorder %s187, %s190
      %p196 = scmp.eq.s32.totalorder %s27, 0
      %p197 = por %p195, %p196
      %p198 = scmp.ne.s32.totalorder %s187, %s190
      %p199 = scmp.eq.s32.totalorder %s32, 1
      %p200 = por %p198, %p199
      %p201 = scmp.ne.s32.totalorder %s190, %s191
      %p202 = scmp.eq.s32.totalorder %s32, 0
      %p203 = por %p201, %p202
      %p204 = scmp.ne.s32.totalorder %s190, %s191
      %p205 = scmp.eq.s32.totalorder %s33, 1
      %p206 = por %p204, %p205
      %p208 = scmp.ne.s32.totalorder %s191, %s207
      %p209 = scmp.eq.s32.totalorder %s33, 0
      %p210 = por %p208, %p209
      %p211 = scmp.le.s32.totalorder 1, %s27
      %p212 = scmp.lt.s32.totalorder %s27, 3
      %p213 = pnand %p211, %p212
      %p214 = pneg %p213
      // Predicated region
      $region9: #{tpu_custom_call.1} parent=5 // pred_check
        _
      $region10: #{tpu_custom_call.1} parent=5 // pred_check_branch
        %216 = sbr.rel (%p213) target = $region12
      $region11: #{tpu_custom_call.1} parent=5 // pred_region
        %s217 = ssub.s32 %s27, 1
      $region12: #{tpu_custom_call.1} parent=5 // pred_fallthru
        _
      %p218 = scmp.lt.s32.totalorder %s27, 2
      // Predicated region
      $region13: #{tpu_custom_call.1} parent=5 // pred_check
        %p219 = pneg %p218
      $region14: #{tpu_custom_call.1} parent=5 // pred_check_branch
        %221 = sbr.rel (%p219) target = $region16
      $region15: #{tpu_custom_call.1} parent=5 // pred_region
        // Predicated region
        $region17: #{tpu_custom_call.1} parent=15 // pred_check
          %p222 = pneg %p61
        $region18: #{tpu_custom_call.1} parent=15 // pred_check_branch
          %224 = sbr.rel (%p222) target = $region20
        $region19: #{tpu_custom_call.1} parent=15 // pred_region
          %s225 = sand.u32 %s51, 1
          %s226 = scalar_lea.sflag [#allocation3], %s225
          %s227 = sand.u32 %s51, 1
          %s228 = smul.addr %s227, 8
          %s229 = scalar_lea.vmem [#allocation2], %s228
          %s231 = ssub.s32 128, 128
          %232 = vsyncadd %s226, %s231
          %s233 = sadd.s32 %s35, %s34
          %s234 = smul.addr %s233, 128
          %s235 = scalar_lea.hbm %s0, %s234
          %s237 = sshll.u32 %s229, 4
          %s238 = int_to_ptr.vmem [resolvable:$true] %s237
          %240 = dma.hbm_to_vmem [thread:$0]  %s235, 128, %s238, %s226
        $region20: #{tpu_custom_call.1} parent=15 // pred_fallthru
          _
        // Predicated region
        $region21: #{tpu_custom_call.1} parent=15 // pred_check
          %p241 = pneg %p87
        $region22: #{tpu_custom_call.1} parent=15 // pred_check_branch
          %243 = sbr.rel (%p241) target = $region24
        $region23: #{tpu_custom_call.1} parent=15 // pred_region
          %s244 = sand.u32 %s27, 1
          %s245 = scalar_lea.sflag [#allocation6], %s244
          %s246 = sand.u32 %s77, 1
          %s247 = smul.addr %s246, 8
          %s248 = scalar_lea.vmem [#allocation5], %s247
          %s250 = ssub.s32 128, 128
          %251 = vsyncadd %s245, %s250
          %s252 = smul.addr %s34, 128
          %s253 = scalar_lea.hbm %s1, %s252
          %s255 = sshll.u32 %s248, 4
          %s256 = int_to_ptr.vmem [resolvable:$true] %s255
          %258 = dma.hbm_to_vmem [thread:$0]  %s253, 128, %s256, %s245
        $region24: #{tpu_custom_call.1} parent=15 // pred_fallthru
          _
        // Predicated region
        $region25: #{tpu_custom_call.1} parent=15 // pred_check
          %p259 = pneg %p113
        $region26: #{tpu_custom_call.1} parent=15 // pred_check_branch
          %261 = sbr.rel (%p259) target = $region28
        $region27: #{tpu_custom_call.1} parent=15 // pred_region
          %s262 = sand.u32 %s27, 1
          %s263 = scalar_lea.sflag [#allocation6], %s262
          %s264 = sand.u32 %s103, 1
          %s265 = smul.addr %s264, 8
          %s266 = scalar_lea.vmem [#allocation7], %s265
          %s268 = ssub.s32 128, 128
          %269 = vsyncadd %s263, %s268
          %s270 = smul.addr %s34, 128
          %s271 = scalar_lea.hbm %s2, %s270
          %s273 = sshll.u32 %s266, 4
          %s274 = int_to_ptr.vmem [resolvable:$true] %s273
          %276 = dma.hbm_to_vmem [thread:$0]  %s271, 128, %s274, %s263
        $region28: #{tpu_custom_call.1} parent=15 // pred_fallthru
          _
        // Predicated region
        $region29: #{tpu_custom_call.1} parent=15 // pred_check
          %p277 = pneg %p141
        $region30: #{tpu_custom_call.1} parent=15 // pred_check_branch
          %279 = sbr.rel (%p277) target = $region32
        $region31: #{tpu_custom_call.1} parent=15 // pred_region
          %s280 = sand.u32 %s131, 1
          %s281 = scalar_lea.sflag [#allocation9], %s280
          %s282 = sand.u32 %s131, 1
          %s283 = smul.addr %s282, 2
          %s284 = scalar_lea.vmem [#allocation8], %s283
          %s286 = ssub.s32 32, 32
          %287 = vsyncadd %s281, %s286
          %s288 = sadd.s32 %s35, %s34
          %s289 = smul.addr %s288, 32
          %s290 = scalar_lea.hbm %s3, %s289
          %s292 = sshll.u32 %s284, 4
          %s293 = int_to_ptr.vmem [resolvable:$true] %s292
          %295 = dma.hbm_to_vmem [thread:$0]  %s290, 32, %s293, %s281
        $region32: #{tpu_custom_call.1} parent=15 // pred_fallthru
          _
      $region16: #{tpu_custom_call.1} parent=5 // pred_fallthru
        _
      %p296 = scmp.le.s32.totalorder 1, %s27
      %p297 = scmp.lt.s32.totalorder %s27, 3
      %p298 = pnand %p296, %p297
      %p299 = pneg %p298
      // Predicated region
      $region33: #{tpu_custom_call.1} parent=5 // pred_check
        _
      $region34: #{tpu_custom_call.1} parent=5 // pred_check_branch
        %301 = sbr.rel (%p298) target = $region36
      $region35: #{tpu_custom_call.1} parent=5 // pred_region
        %s302 = ssub.s32 %s27, 1
        %s303 = sand.u32 %s54, 1
        %s304 = scalar_lea.sflag [#allocation3], %s303
        %s305 = sand.u32 %s54, 1
        %s306 = smul.addr %s305, 8
        %s307 = scalar_lea.vmem [#allocation2], %s306
        // Predicated region
        $region37: #{tpu_custom_call.1} parent=35 // pred_check
          %p308 = pneg %p67
        $region38: #{tpu_custom_call.1} parent=35 // pred_check_branch
          %310 = sbr.rel (%p308) target = $region40
        $region39: #{tpu_custom_call.1} parent=35 // pred_region
          %311 = dma.done %s304, 128
        $region40: #{tpu_custom_call.1} parent=35 // pred_fallthru
          _
        %s312 = sand.u32 %s32, 1
        %s313 = scalar_lea.sflag [#allocation6], %s312
        %s314 = sand.u32 %s80, 1
        %s315 = smul.addr %s314, 8
        %s316 = scalar_lea.vmem [#allocation5], %s315
        // Predicated region
        $region41: #{tpu_custom_call.1} parent=35 // pred_check
          %p317 = pneg %p93
        $region42: #{tpu_custom_call.1} parent=35 // pred_check_branch
          %319 = sbr.rel (%p317) target = $region44
        $region43: #{tpu_custom_call.1} parent=35 // pred_region
          %320 = dma.done %s313, 128
        $region44: #{tpu_custom_call.1} parent=35 // pred_fallthru
          _
        %s321 = sand.u32 %s32, 1
        %s322 = scalar_lea.sflag [#allocation6], %s321
        %s323 = sand.u32 %s106, 1
        %s324 = smul.addr %s323, 8
        %s325 = scalar_lea.vmem [#allocation7], %s324
        // Predicated region
        $region45: #{tpu_custom_call.1} parent=35 // pred_check
          %p326 = pneg %p119
        $region46: #{tpu_custom_call.1} parent=35 // pred_check_branch
          %328 = sbr.rel (%p326) target = $region48
        $region47: #{tpu_custom_call.1} parent=35 // pred_region
          %329 = dma.done %s322, 128
        $region48: #{tpu_custom_call.1} parent=35 // pred_fallthru
          _
        %s330 = sand.u32 %s134, 1
        %s331 = scalar_lea.sflag [#allocation9], %s330
        %s332 = sand.u32 %s134, 1
        %s333 = smul.addr %s332, 2
        %s334 = scalar_lea.vmem [#allocation8], %s333
        // Predicated region
        $region49: #{tpu_custom_call.1} parent=35 // pred_check
          %p335 = pneg %p147
        $region50: #{tpu_custom_call.1} parent=35 // pred_check_branch
          %337 = sbr.rel (%p335) target = $region52
        $region51: #{tpu_custom_call.1} parent=35 // pred_region
          %338 = dma.done %s331, 32
        $region52: #{tpu_custom_call.1} parent=35 // pred_fallthru
          _
        %s339 = sand.u32 %s54, 1
        %s340 = scalar_lea.sflag [#allocation3], %s339
        %s341 = sand.u32 %s54, 1
        %s342 = smul.addr %s341, 8
        %s343 = scalar_lea.vmem [#allocation2], %s342
        %p344 = pneg %p67
        %p345 = pneg %p64
        %s346 = sand.u32 %s32, 1
        %s347 = scalar_lea.sflag [#allocation6], %s346
        %s348 = sand.u32 %s80, 1
        %s349 = smul.addr %s348, 8
        %s350 = scalar_lea.vmem [#allocation5], %s349
        %p351 = pneg %p93
        %p352 = pneg %p90
        %s353 = sand.u32 %s32, 1
        %s354 = scalar_lea.sflag [#allocation6], %s353
        %s355 = sand.u32 %s106, 1
        %s356 = smul.addr %s355, 8
        %s357 = scalar_lea.vmem [#allocation7], %s356
        %p358 = pneg %p119
        %p359 = pneg %p116
        %s360 = sand.u32 %s134, 1
        %s361 = scalar_lea.sflag [#allocation9], %s360
        %s362 = sand.u32 %s134, 1
        %s363 = smul.addr %s362, 2
        %s364 = scalar_lea.vmem [#allocation8], %s363
        %p365 = pneg %p147
        %p366 = pneg %p144
        %p367 = pneg %p175
        %p368 = pneg %p172
        %s369 = sand.u32 %s162, 1
        %s370 = scalar_lea.sflag [#allocation4], %s369
        %s371 = sand.u32 %s162, 1
        %s372 = smul.addr %s371, 8
        %s373 = scalar_lea.vmem [#allocation10], %s372
        %p374 = pneg %p203
        %p375 = pneg %p200
        %s376 = sand.u32 %s190, 1
        %s377 = scalar_lea.sflag [#allocation12], %s376
        %s378 = sand.u32 %s190, 1
        %s379 = smul.addr %s378, 8
        %s380 = scalar_lea.vmem [#allocation11], %s379
        %v381 = vld [vmem:[%s307] sm:$0xff]
        %v382 = vmul.f32 %v381, 0.17677669
        %v383 = vld [vmem:[%s316] sm:$0xff]
        %v384 = vld [vmem:[%s334] sm:$0x3]
        %v385 = vunpack.c.0.s8 %v384
        %v386 = vcvt.s32.f32 %v385
        %v387 = vmul.f32 %v386, -1e+30
        %vm388 = vcmask 261120
        %v390 = vsel %vm388, %v382, 0
        %v393 = vsel %vm388, %v383, 0
        %395 = vmatprep.subr.mxu0 0.0
        %396 = vmatpush1.xpose.msra.mxu0 %v393
        %397 = vmatprep.subr.mxu0 0.0
        %398 = vmatpush1.xpose.msra.mxu0 0.0
        %399 = vmatprep.subr.mxu0 0.0
        %400 = vmatpush1.xpose.msra.mxu0 0.0
        %401 = vmatprep.subr.mxu0 0.0
        %402 = vmatpush1.xpose.msra.mxu0 0.0
        %403 = vmatprep.subr.mxu0 0.0
        %404 = vmatpush1.xpose.msra.mxu0 0.0
        %405 = vmatprep.subr.mxu0 0.0
        %406 = vmatpush1.xpose.msra.mxu0 0.0
        %407 = vmatprep.subr.mxu0 0.0
        %408 = vmatpush1.xpose.msra.mxu0 0.0
        %409 = vmatprep.subr.mxu0 0.0
        %410 = vmatpush1.xpose.msra.mxu0 0.0
        %411 = vmatprep.subr.mxu0 0.0
        %412 = vmatpush1.xpose.msra.mxu0 0.0
        %413 = vmatprep.subr.mxu0 0.0
        %414 = vmatpush1.xpose.msra.mxu0 0.0
        %415 = vmatprep.subr.mxu0 0.0
        %416 = vmatpush1.xpose.msra.mxu0 0.0
        %417 = vmatprep.subr.mxu0 0.0
        %418 = vmatpush1.xpose.msra.mxu0 0.0
        %419 = vmatprep.subr.mxu0 0.0
        %420 = vmatpush1.xpose.msra.mxu0 0.0
        %421 = vmatprep.subr.mxu0 0.0
        %422 = vmatpush1.xpose.msra.mxu0 0.0
        %423 = vmatprep.subr.mxu0 0.0
        %424 = vmatpush1.xpose.msra.mxu0 0.0
        %425 = vmatprep.subr.mxu0 0.0
        %426 = vmatpush1.xpose.msra.mxu0 0.0
        %427 = vmatprep.subr.mxu0 0.0
        %428 = vmatpush1.xpose.msra.mxu0 0.0
        %429 = vmatprep.subr.mxu0 0.0
        %430 = vmatpush1.xpose.msra.mxu0 0.0
        %431 = vmatprep.subr.mxu0 0.0
        %432 = vmatpush1.xpose.msra.mxu0 0.0
        %433 = vmatprep.subr.mxu0 0.0
        %434 = vmatpush1.xpose.msra.mxu0 0.0
        %435 = vmatprep.subr.mxu0 0.0
        %436 = vmatpush1.xpose.msra.mxu0 0.0
        %437 = vmatprep.subr.mxu0 0.0
        %438 = vmatpush1.xpose.msra.mxu0 0.0
        %439 = vmatprep.subr.mxu0 0.0
        %440 = vmatpush1.xpose.msra.mxu0 0.0
        %441 = vmatprep.subr.mxu0 0.0
        %442 = vmatpush1.xpose.msra.mxu0 0.0
        %443 = vmatprep.subr.mxu0 0.0
        %444 = vmatpush1.xpose.msra.mxu0 0.0
        %445 = vmatprep.subr.mxu0 0.0
        %446 = vmatpush1.xpose.msra.mxu0 0.0
        %447 = vmatprep.subr.mxu0 0.0
        %448 = vmatpush1.xpose.msra.mxu0 0.0
        %449 = vmatprep.subr.mxu0 0.0
        %450 = vmatpush1.xpose.msra.mxu0 0.0
        %451 = vmatprep.subr.mxu0 0.0
        %452 = vmatpush1.xpose.msra.mxu0 0.0
        %453 = vmatprep.subr.mxu0 0.0
        %454 = vmatpush1.xpose.msra.mxu0 0.0
        %455 = vmatprep.subr.mxu0 0.0
        %456 = vmatpush1.xpose.msra.mxu0 0.0
        %457 = vmatprep.subr.mxu0 0.0
        %458 = vmatpush1.xpose.msra.mxu0 0.0
        %459 = vmatprep.mubr.f32.mxu0 0.0
        %460 = vmatmul.mubr.f32.gmra.mrb[0].mxu0 %v390
        %v461 = vpop.f32.mrb[0].mxu0
        %v462 = vadd.f32 %v387, %v461
        %v463 = vpop.f32.mrb[0].mxu0
        %464 = vdwg.mxu0
        %vm465 = vcmask 64512
        %v466 = vsel %vm465, %v462, -inf
        %467 = vmax.xlane.f32.xlu0 %v466
        %v468 = vpop.xlane.xlu0 %467
        %v469 = vsub.f32 %v462, %v468
        %v470 = vmul.f32 %v469, 1.442695
        %v471 = vpow.pop %v470
        %v472 = vsel %vm465, %v471, 0.0
        %473 = vadd.xlane.f32.xlu0 %v472
        %v474 = vpop.xlane.xlu0 %473
        %v475 = vrcp.pop %v474
        %v476 = vmul.f32 %v474, %v475
        %v477 = vsub.f32 2.0, %v476
        %v478 = vmul.f32 %v475, %v477
        %v479 = vmul.f32 %v471, %v478
        %480 = vst.msk [vmem:[%s380] sm:$0xff] %vm465, %v479
        %v481 = vld [vmem:[%s325] sm:$0xff]
        %v483 = vsel %vm465, %v479, 0
        %485 = vmatprep.subr.mxu0 0.0
        %486 = vmatpush1.msra.mxu0 %v481
        %487 = vmatprep.subr.mxu0 0.0
        %488 = vmatpush1.msra.mxu0 0.0
        %489 = vmatprep.subr.mxu0 0.0
        %490 = vmatpush1.msra.mxu0 0.0
        %491 = vmatprep.subr.mxu0 0.0
        %492 = vmatpush1.msra.mxu0 0.0
        %493 = vmatprep.subr.mxu0 0.0
        %494 = vmatpush1.msra.mxu0 0.0
        %495 = vmatprep.subr.mxu0 0.0
        %496 = vmatpush1.msra.mxu0 0.0
        %497 = vmatprep.subr.mxu0 0.0
        %498 = vmatpush1.msra.mxu0 0.0
        %499 = vmatprep.subr.mxu0 0.0
        %500 = vmatpush1.msra.mxu0 0.0
        %501 = vmatprep.subr.mxu0 0.0
        %502 = vmatpush1.msra.mxu0 0.0
        %503 = vmatprep.subr.mxu0 0.0
        %504 = vmatpush1.msra.mxu0 0.0
        %505 = vmatprep.subr.mxu0 0.0
        %506 = vmatpush1.msra.mxu0 0.0
        %507 = vmatprep.subr.mxu0 0.0
        %508 = vmatpush1.msra.mxu0 0.0
        %509 = vmatprep.subr.mxu0 0.0
        %510 = vmatpush1.msra.mxu0 0.0
        %511 = vmatprep.subr.mxu0 0.0
        %512 = vmatpush1.msra.mxu0 0.0
        %513 = vmatprep.subr.mxu0 0.0
        %514 = vmatpush1.msra.mxu0 0.0
        %515 = vmatprep.subr.mxu0 0.0
        %516 = vmatpush1.msra.mxu0 0.0
        %517 = vmatprep.subr.mxu0 0.0
        %518 = vmatpush1.msra.mxu0 0.0
        %519 = vmatprep.subr.mxu0 0.0
        %520 = vmatpush1.msra.mxu0 0.0
        %521 = vmatprep.subr.mxu0 0.0
        %522 = vmatpush1.msra.mxu0 0.0
        %523 = vmatprep.subr.mxu0 0.0
        %524 = vmatpush1.msra.mxu0 0.0
        %525 = vmatprep.subr.mxu0 0.0
        %526 = vmatpush1.msra.mxu0 0.0
        %527 = vmatprep.subr.mxu0 0.0
        %528 = vmatpush1.msra.mxu0 0.0
        %529 = vmatprep.subr.mxu0 0.0
        %530 = vmatpush1.msra.mxu0 0.0
        %531 = vmatprep.subr.mxu0 0.0
        %532 = vmatpush1.msra.mxu0 0.0
        %533 = vmatprep.subr.mxu0 0.0
        %534 = vmatpush1.msra.mxu0 0.0
        %535 = vmatprep.subr.mxu0 0.0
        %536 = vmatpush1.msra.mxu0 0.0
        %537 = vmatprep.subr.mxu0 0.0
        %538 = vmatpush1.msra.mxu0 0.0
        %539 = vmatprep.subr.mxu0 0.0
        %540 = vmatpush1.msra.mxu0 0.0
        %541 = vmatprep.subr.mxu0 0.0
        %542 = vmatpush1.msra.mxu0 0.0
        %543 = vmatprep.subr.mxu0 0.0
        %544 = vmatpush1.msra.mxu0 0.0
        %545 = vmatprep.subr.mxu0 0.0
        %546 = vmatpush1.msra.mxu0 0.0
        %547 = vmatprep.subr.mxu0 0.0
        %548 = vmatpush1.msra.mxu0 0.0
        %549 = vmatprep.mubr.f32.mxu0 0.0
        %550 = vmatmul.mubr.f32.gmra.mrb[0].mxu0 %v483
        %v551 = vpop.f32.mrb[0].mxu0
        %v552 = vadd.f32 0.0, %v551
        %v553 = vpop.f32.mrb[0].mxu0
        %554 = vdwg.mxu0
        %555 = vst.msk [vmem:[%s373] sm:$0xff] %vm388, %v552
        %s556 = sand.u32 %s162, 1
        %s557 = scalar_lea.sflag [#allocation4], %s556
        %s558 = sand.u32 %s162, 1
        %s559 = smul.addr %s558, 8
        %s560 = scalar_lea.vmem [#allocation10], %s559
        %s561 = sand.u32 %s190, 1
        %s562 = scalar_lea.sflag [#allocation12], %s561
        %s563 = sand.u32 %s190, 1
        %s564 = smul.addr %s563, 8
        %s565 = scalar_lea.vmem [#allocation11], %s564
        // Predicated region
        $region53: #{tpu_custom_call.1} parent=35 // pred_check
          %p566 = pneg %p172
        $region54: #{tpu_custom_call.1} parent=35 // pred_check_branch
          %568 = sbr.rel (%p566) target = $region56
        $region55: #{tpu_custom_call.1} parent=35 // pred_region
          %s570 = ssub.s32 128, 128
          %571 = vsyncadd %s557, %s570
          %s572 = sadd.s32 %s37, %s36
          %s573 = smul.addr %s572, 128
          %s574 = scalar_lea.hbm %s4, %s573
          %s576 = sshll.u32 %s560, 4
          %s577 = int_to_ptr.vmem [resolvable:$true] %s576
          %579 = dma.vmem_to_hbm [thread:$0]  %s577, 128, %s574, %s557
        $region56: #{tpu_custom_call.1} parent=35 // pred_fallthru
          _
        // Predicated region
        $region57: #{tpu_custom_call.1} parent=35 // pred_check
          %p580 = pneg %p200
        $region58: #{tpu_custom_call.1} parent=35 // pred_check_branch
          %582 = sbr.rel (%p580) target = $region60
        $region59: #{tpu_custom_call.1} parent=35 // pred_region
          %s584 = ssub.s32 128, 128
          %585 = vsyncadd %s562, %s584
          %s586 = sadd.s32 %s37, %s36
          %s587 = smul.addr %s586, 128
          %s588 = scalar_lea.hbm %s5, %s587
          %s590 = sshll.u32 %s565, 4
          %s591 = int_to_ptr.vmem [resolvable:$true] %s590
          %593 = dma.vmem_to_hbm [thread:$0]  %s591, 128, %s588, %s562
        $region60: #{tpu_custom_call.1} parent=35 // pred_fallthru
          _
      $region36: #{tpu_custom_call.1} parent=5 // pred_fallthru
        _
      %p594 = scmp.le.s32.totalorder 2, %s27
      // Predicated region
      $region61: #{tpu_custom_call.1} parent=5 // pred_check
        %p595 = pneg %p594
      $region62: #{tpu_custom_call.1} parent=5 // pred_check_branch
        %597 = sbr.rel (%p595) target = $region64
      $region63: #{tpu_custom_call.1} parent=5 // pred_region
        %s598 = ssub.s32 %s27, 2
        // Predicated region
        $region65: #{tpu_custom_call.1} parent=63 // pred_check
          %p599 = pneg %p178
        $region66: #{tpu_custom_call.1} parent=63 // pred_check_branch
          %601 = sbr.rel (%p599) target = $region68
        $region67: #{tpu_custom_call.1} parent=63 // pred_region
          %s602 = sand.u32 %s163, 1
          %s603 = scalar_lea.sflag [#allocation4], %s602
          %s604 = sand.u32 %s163, 1
          %s605 = smul.addr %s604, 8
          %s606 = scalar_lea.vmem [#allocation10], %s605
          %607 = dma.done %s603, 128
        $region68: #{tpu_custom_call.1} parent=63 // pred_fallthru
          _
        // Predicated region
        $region69: #{tpu_custom_call.1} parent=63 // pred_check
          %p608 = pneg %p206
        $region70: #{tpu_custom_call.1} parent=63 // pred_check_branch
          %610 = sbr.rel (%p608) target = $region72
        $region71: #{tpu_custom_call.1} parent=63 // pred_region
          %s611 = sand.u32 %s191, 1
          %s612 = scalar_lea.sflag [#allocation12], %s611
          %s613 = sand.u32 %s191, 1
          %s614 = smul.addr %s613, 8
          %s615 = scalar_lea.vmem [#allocation11], %s614
          %616 = dma.done %s612, 128
        $region72: #{tpu_custom_call.1} parent=63 // pred_fallthru
          _
      $region64: #{tpu_custom_call.1} parent=5 // pred_fallthru
        _
    $region6: #{tpu_custom_call.1} parent=1 // loop_footer
      %s31 = sadd.s32 1, %s27
    $region7: #{tpu_custom_call.1} parent=1 // loop_footer_branch
      %26 = sbr.rel target = $region3
    $region8: #{tpu_custom_call.1} parent=1 // loop_exit
      _
    %617 = vsyncpa [#allocation3], 1
    %s618 = scalar_lea.sflag [#allocation3], 1
    %619 = vsyncpa %s618, 1
    %620 = vsyncpa [#allocation6], 1
    %s621 = scalar_lea.sflag [#allocation6], 1
    %622 = vsyncpa %s621, 1
    %623 = vsyncpa [#allocation9], 1
    %s624 = scalar_lea.sflag [#allocation9], 1
    %625 = vsyncpa %s624, 1
    %626 = vsyncpa [#allocation4], 1
    %s627 = scalar_lea.sflag [#allocation4], 1
    %628 = vsyncpa %s627, 1
    %629 = vsyncpa [#allocation12], 1
    %s630 = scalar_lea.sflag [#allocation12], 1
    %631 = vsyncpa %s630, 1

</llo_original>
